<compile_context>
chip_gen: v7x
topology: tpu7x:2x2x1
jax: 0.10.0
libtpu: 0.0.40
codegen_flags: <defaults>
</compile_context>

<pallas_src>
import jax
import jax.numpy as jnp
from jax.experimental import pallas as pl
from jax.experimental.pallas import tpu as pltpu

DROP_P = 0.1
_KEEP_SCALE = 1.0 / (1.0 - DROP_P)
_DROP_THRESHOLD_24 = int(DROP_P * (1 << 24))  # compare against 24 uniform bits


def _sfdp_kernel(seed_ref, q_ref, k_ref, v_ref, m_ref, o_ref):
    rows, cols = q_ref.shape

    q = q_ref[...].astype(jnp.float32)
    k = k_ref[...].astype(jnp.float32)

    # softmax(query * key, axis=-1)
    s = q * k
    s_max = jnp.max(s, axis=-1, keepdims=True)
    e = jnp.exp(s - s_max)
    denom = jnp.sum(e, axis=-1, keepdims=True)
    qk = e * (1.0 / denom)  # cheap (rows,1) reciprocal, broadcast multiply

    # + attn_mask (block is pre-tiled to the row-tile shape, resident in VMEM)
    qk = qk + m_ref[...].astype(jnp.float32)

    # dropout(p=0.1, train=True): keep w.p. 1-p, scale kept values by 1/(1-p).
    # Counter-based hash PRNG: unique per global element, independent of tiling.
    tile_idx = pl.program_id(0)
    row_ids = jax.lax.broadcasted_iota(jnp.uint32, (rows, cols), 0)
    col_ids = jax.lax.broadcasted_iota(jnp.uint32, (rows, cols), 1)
    base = (tile_idx * rows).astype(jnp.uint32)
    gid = (base + row_ids) * jnp.uint32(cols) + col_ids
    h = gid ^ (seed_ref[0].astype(jnp.uint32) * jnp.uint32(0x9E3779B9))
    # murmur3 fmix32 finalizer (integer ops only -> VPU; no float conversion)
    h = h ^ (h >> jnp.uint32(16))
    h = h * jnp.uint32(0x85EBCA6B)
    h = h ^ (h >> jnp.uint32(13))
    h = h * jnp.uint32(0xC2B2AE35)
    h = h ^ (h >> jnp.uint32(16))
    h24 = (h >> jnp.uint32(8)).astype(jnp.int32)   # uniform integer in [0, 2^24)
    keep = h24 >= _DROP_THRESHOLD_24               # P(keep) = 1 - p
    attn_weight = jnp.where(keep, qk * jnp.float32(_KEEP_SCALE), jnp.float32(0.0))

    # output = attn_weight * value (elementwise)
    o_ref[...] = (attn_weight * v_ref[...].astype(jnp.float32)).astype(o_ref.dtype)


def _pick_rows_per_tile(bh, s, target):
    """Rows per tile = k*s with k | bh (keeps the S-periodic mask aligned),
    a multiple of 8 (sublane) unless it is the whole array, as close to
    `target` as possible without exceeding it."""
    total = bh * s
    candidates = []
    for k in range(1, bh + 1):
        if bh % k:
            continue
        t = k * s
        if t % 8 != 0 and t != total:
            continue
        candidates.append(t)
    under = [c for c in candidates if c <= target]
    return max(under) if under else min(candidates)


@jax.jit
def sfdp_pallas(query, key, value, attn_mask, seed):
    B, H, S, D = query.shape
    R = B * H * S

    tile_rows = _pick_rows_per_tile(B * H, S, target=1024)
    num_tiles = R // tile_rows
    reps = tile_rows // S

    q2 = query.reshape(R, D)
    k2 = key.reshape(R, D)
    v2 = value.reshape(R, D)
    m2 = attn_mask.reshape(S, D)
    m_tiled = jnp.tile(m2, (reps, 1)) if reps > 1 else m2  # one resident block

    grid_spec = pltpu.PrefetchScalarGridSpec(
        num_scalar_prefetch=1,
        grid=(num_tiles,),
        in_specs=[
            pl.BlockSpec((tile_rows, D), lambda i, seed_ref: (i, 0)),
            pl.BlockSpec((tile_rows, D), lambda i, seed_ref: (i, 0)),
            pl.BlockSpec((tile_rows, D), lambda i, seed_ref: (i, 0)),
            pl.BlockSpec((tile_rows, D), lambda i, seed_ref: (0, 0)),  # mask: fixed block
        ],
        out_specs=pl.BlockSpec((tile_rows, D), lambda i, seed_ref: (i, 0)),
    )

    out2 = pl.pallas_call(
        _sfdp_kernel,
        out_shape=jax.ShapeDtypeStruct((R, D), query.dtype),
        grid_spec=grid_spec,
        compiler_params=pltpu.CompilerParams(
            dimension_semantics=("parallel",),      # independent tiles -> 2 TCs on v7x
            vmem_limit_bytes=32 * 1024 * 1024,      # explicit; safe on v5e/v6e/v7x
        ),
    )(seed, q2, k2, v2, m_tiled)

    return out2.reshape(B, H, S, D)


if __name__ == "__main__":
    # Small shapes consistent with the module's forward:
    # query/key/value: (B, H, S, D), attn_mask: (1, 1, S, D)
    B, H, S, D = 2, 4, 16, 128
    k0, k1, k2, k3 = jax.random.split(jax.random.PRNGKey(0), 4)
    query = jax.random.normal(k0, (B, H, S, D), dtype=jnp.float32)
    key = jax.random.normal(k1, (B, H, S, D), dtype=jnp.float32)
    value = jax.random.normal(k2, (B, H, S, D), dtype=jnp.float32)
    attn_mask = jax.random.normal(k3, (1, 1, S, D), dtype=jnp.float32)
    seed = jnp.array([0], dtype=jnp.int32)

    out = sfdp_pallas(query, key, value, attn_mask, seed)
    jax.block_until_ready(out)
    assert out.shape == (B, H, S, D) and out.dtype == jnp.float32

    # Correctness check (dropout is stochastic: kept elements must equal the
    # non-dropout reference scaled by 1/(1-p); keep fraction must be ~0.9).
    ref = (jax.nn.softmax(query * key, axis=-1) + attn_mask) * value * _KEEP_SCALE
    kept = out != 0
    assert jnp.allclose(out, jnp.where(kept, ref, 0.0), rtol=2e-5, atol=2e-5)
    frac = float(jnp.mean(kept.astype(jnp.float32)))
    assert 0.80 < frac < 0.97

    print("KERNEL_OK")
</pallas_src>

<mosaic_0001>
module attributes {stable_mosaic.version = 11 : i64} {
  func.func @_sfdp_kernel(%arg0: i32, %arg1: memref<1xi32, #tpu.memory_space<smem>>, %arg2: memref<128x128xf32, #tpu.memory_space<vmem>>, %arg3: memref<128x128xf32, #tpu.memory_space<vmem>>, %arg4: memref<128x128xf32, #tpu.memory_space<vmem>>, %arg5: memref<128x128xf32, #tpu.memory_space<vmem>>, %arg6: memref<128x128xf32, #tpu.memory_space<vmem>>) attributes {dimension_semantics = [#tpu.dimension_semantics<parallel>], iteration_bounds = array<i64: 1>, scalar_prefetch = 1 : i64, scratch_operands = 0 : i64, tpu.core_type = #tpu.core_type<tc>, window_params = [{transform_indices = @transform_0, window_bounds = array<i64: 128, 128>}, {transform_indices = @transform_1, window_bounds = array<i64: 128, 128>}, {transform_indices = @transform_2, window_bounds = array<i64: 128, 128>}, {pipeline_mode = #tpu.pipeline_mode<synchronous>, transform_indices = @transform_3, window_bounds = array<i64: 128, 128>}, {transform_indices = @transform_4, window_bounds = array<i64: 128, 128>}]} {
    %c0 = arith.constant 0 : index
    %c0_0 = arith.constant 0 : index
    %0 = vector.load %arg2[%c0, %c0_0] : memref<128x128xf32, #tpu.memory_space<vmem>>, vector<128x128xf32>
    %c0_1 = arith.constant 0 : index
    %c0_2 = arith.constant 0 : index
    %1 = vector.load %arg3[%c0_1, %c0_2] : memref<128x128xf32, #tpu.memory_space<vmem>>, vector<128x128xf32>
    %2 = arith.mulf %0, %1 : vector<128x128xf32>
    %cst = arith.constant dense<0xFF800000> : vector<128xf32>
    %3 = vector.multi_reduction <maximumf>, %2, %cst [1] : vector<128x128xf32> to vector<128xf32>
    %4 = vector.shape_cast %3 : vector<128xf32> to vector<128x1xf32>
    %5 = vector.broadcast %4 : vector<128x1xf32> to vector<128x128xf32>
    %6 = arith.subf %2, %5 : vector<128x128xf32>
    %7 = math.exp %6 : vector<128x128xf32>
    %cst_3 = arith.constant dense<0.000000e+00> : vector<128xf32>
    %8 = vector.multi_reduction <add>, %7, %cst_3 [1] : vector<128x128xf32> to vector<128xf32>
    %9 = vector.shape_cast %8 : vector<128xf32> to vector<128x1xf32>
    %cst_4 = arith.constant 1.000000e+00 : f32
    %10 = vector.broadcast %cst_4 : f32 to vector<128x1xf32>
    %11 = arith.divf %10, %9 : vector<128x1xf32>
    %12 = vector.broadcast %11 : vector<128x1xf32> to vector<128x128xf32>
    %13 = arith.mulf %7, %12 : vector<128x128xf32>
    %c0_5 = arith.constant 0 : index
    %c0_6 = arith.constant 0 : index
    %14 = vector.load %arg5[%c0_5, %c0_6] : memref<128x128xf32, #tpu.memory_space<vmem>>, vector<128x128xf32>
    %15 = arith.addf %13, %14 : vector<128x128xf32>
    %16 = tpu.iota {dimensions = array<i32: 0>} : vector<128x128xi32>
    %17 = tpu.iota {dimensions = array<i32: 1>} : vector<128x128xi32>
    %c128_i32 = arith.constant 128 : i32
    %18 = arith.muli %arg0, %c128_i32 : i32
    %19 = vector.broadcast %18 : i32 to vector<128x128xi32>
    %20 = arith.addi %19, %16 : vector<128x128xi32>
    %c128_i32_7 = arith.constant 128 : i32
    %21 = vector.broadcast %c128_i32_7 : i32 to vector<128x128xi32>
    %22 = arith.muli %20, %21 : vector<128x128xi32>
    %23 = arith.addi %22, %17 : vector<128x128xi32>
    %c0_8 = arith.constant 0 : index
    %24 = memref.load %arg1[%c0_8] : memref<1xi32, #tpu.memory_space<smem>>
    %c-1640531527_i32 = arith.constant -1640531527 : i32
    %25 = arith.muli %24, %c-1640531527_i32 : i32
    %26 = vector.broadcast %25 : i32 to vector<128x128xi32>
    %27 = arith.xori %23, %26 : vector<128x128xi32>
    %c16_i32 = arith.constant 16 : i32
    %28 = vector.broadcast %c16_i32 : i32 to vector<128x128xi32>
    %29 = arith.shrui %27, %28 : vector<128x128xi32>
    %30 = arith.xori %27, %29 : vector<128x128xi32>
    %c-2048144789_i32 = arith.constant -2048144789 : i32
    %31 = vector.broadcast %c-2048144789_i32 : i32 to vector<128x128xi32>
    %32 = arith.muli %30, %31 : vector<128x128xi32>
    %c13_i32 = arith.constant 13 : i32
    %33 = vector.broadcast %c13_i32 : i32 to vector<128x128xi32>
    %34 = arith.shrui %32, %33 : vector<128x128xi32>
    %35 = arith.xori %32, %34 : vector<128x128xi32>
    %c-1028477387_i32 = arith.constant -1028477387 : i32
    %36 = vector.broadcast %c-1028477387_i32 : i32 to vector<128x128xi32>
    %37 = arith.muli %35, %36 : vector<128x128xi32>
    %c16_i32_9 = arith.constant 16 : i32
    %38 = vector.broadcast %c16_i32_9 : i32 to vector<128x128xi32>
    %39 = arith.shrui %37, %38 : vector<128x128xi32>
    %40 = arith.xori %37, %39 : vector<128x128xi32>
    %c8_i32 = arith.constant 8 : i32
    %41 = vector.broadcast %c8_i32 : i32 to vector<128x128xi32>
    %42 = arith.shrui %40, %41 : vector<128x128xi32>
    %c1677721_i32 = arith.constant 1677721 : i32
    %43 = vector.broadcast %c1677721_i32 : i32 to vector<128x128xi32>
    %44 = arith.cmpi sge, %42, %43 : vector<128x128xi32>
    %cst_10 = arith.constant 1.11111116 : f32
    %45 = vector.broadcast %cst_10 : f32 to vector<128x128xf32>
    %46 = arith.mulf %15, %45 : vector<128x128xf32>
    %cst_11 = arith.constant 0.000000e+00 : f32
    %47 = vector.broadcast %cst_11 : f32 to vector<128x128xf32>
    %48 = arith.select %44, %46, %47 : vector<128x128xi1>, vector<128x128xf32>
    %c0_12 = arith.constant 0 : index
    %c0_13 = arith.constant 0 : index
    %49 = vector.load %arg4[%c0_12, %c0_13] : memref<128x128xf32, #tpu.memory_space<vmem>>, vector<128x128xf32>
    %50 = arith.mulf %48, %49 : vector<128x128xf32>
    %c0_14 = arith.constant 0 : index
    %c0_15 = arith.constant 0 : index
    %51 = vector.load %arg6[%c0_14, %c0_15] : memref<128x128xf32, #tpu.memory_space<vmem>>, vector<128x128xf32>
    tpu.vector_store %arg6[%c0_14, %c0_15], %50 {strides = array<i32>} : memref<128x128xf32, #tpu.memory_space<vmem>>, vector<128x128xf32>,
    return
  }
  func.func @transform_0(%arg0: i32, %arg1: memref<1xi32, #tpu.memory_space<smem>>) -> (i32, i32) {
    %c0_i32 = arith.constant 0 : i32
    %c0_i32_0 = arith.constant 0 : i32
    return %arg0, %c0_i32 : i32, i32
  }
  func.func @transform_1(%arg0: i32, %arg1: memref<1xi32, #tpu.memory_space<smem>>) -> (i32, i32) {
    %c0_i32 = arith.constant 0 : i32
    %c0_i32_0 = arith.constant 0 : i32
    return %arg0, %c0_i32 : i32, i32
  }
  func.func @transform_2(%arg0: i32, %arg1: memref<1xi32, #tpu.memory_space<smem>>) -> (i32, i32) {
    %c0_i32 = arith.constant 0 : i32
    %c0_i32_0 = arith.constant 0 : i32
    return %arg0, %c0_i32 : i32, i32
  }
  func.func @transform_3(%arg0: i32, %arg1: memref<1xi32, #tpu.memory_space<smem>>) -> (i32, i32) {
    %c0_i32 = arith.constant 0 : i32
    %c0_i32_0 = arith.constant 0 : i32
    %c0_i32_1 = arith.constant 0 : i32
    return %c0_i32, %c0_i32_0 : i32, i32
  }
  func.func @transform_4(%arg0: i32, %arg1: memref<1xi32, #tpu.memory_space<smem>>) -> (i32, i32) {
    %c0_i32 = arith.constant 0 : i32
    %c0_i32_0 = arith.constant 0 : i32
    return %arg0, %c0_i32 : i32, i32
  }
}

</mosaic_0001>

<llo_original>
// kernel: sfdp_pallas.1
$region0: #{sfdp_pallas.1}
  #allocation0 [shape = 'u32[]', space=smem, size = 0x4, offset = 0x4, fixed_abs, tag = 'smem constant byte address 0x4 - core index']
  #allocation1 [shape = 'u32[144,128]{1,0:T(1,128)}', space=vmem, size = 0x12000, scoped, tag = 'internal scratch']
  #allocation2 [shape = 's32[1]{0}', space=sflag, size = 0x4, scoped, tag = 'scoped memory for sfdp_pallas.1']
  #allocation3 [shape = 's32[1]{0:T(128)S(6)}', space=smem, size = 0x200, scoped, tag = 'prefetched SMEM operand 0']
  %s0 = inlined_call_operand.<no memory space> [shape: s32[1], index: 0, kind: input, shape index: {}]
  %s1 = inlined_call_operand.vmem [shape: f32[128,128], index: 1, kind: input, shape index: {}]
  %s2 = inlined_call_operand.hbm [shape: f32[128,128], index: 2, kind: input, shape index: {}]
  %s3 = inlined_call_operand.hbm [shape: f32[128,128], index: 3, kind: input, shape index: {}]
  %s4 = inlined_call_operand.vmem [shape: f32[128,128], index: 4, kind: input, shape index: {}]
  %s5 = inlined_call_operand.hbm [shape: f32[128,128], index: 5, kind: output, shape index: {}]
  %s6 = sld [smem:[#allocation0]]
  $region34: #{sfdp_pallas.1} parent=0
    _
  %s8 = ssub.s32 1, %s6
  %s9 = scalar_select 0, %s8, %s6
  %10 = sst [smem:[#allocation3]] %s0
  $region1: #{sfdp_pallas.1} parent=0
    #allocation4 [shape = 'u8[65536]{0}', space=vmem, size = 0x10000, scoped, tag = 'input window, operand 2, single buffered']
    #allocation5 [shape = 's32[1]{0}', space=sflag, size = 0x4, scoped, tag = 'scoped memory for sfdp_pallas.1']
    #allocation6 [shape = 's32[1]{0}', space=sflag, size = 0x4, scoped, tag = 'scoped memory for sfdp_pallas.1']
    #allocation7 [shape = 'u8[65536]{0}', space=vmem, size = 0x10000, scoped, tag = 'input window, operand 3, single buffered']
    #allocation8 [shape = 's32[1]{0}', space=sflag, size = 0x4, scoped, tag = 'scoped memory for sfdp_pallas.1']
    #allocation9 [shape = 'u8[65536]{0}', space=vmem, size = 0x10000, scoped, tag = 'output window, operand 0, single buffered']
    %11 = vsyncpa [#allocation5], 0
    %12 = vsyncpa [#allocation8], 0
    %13 = vsyncpa [#allocation6], 0
    // Predicated region
    $region2: #{sfdp_pallas.1} parent=1 // pred_check
      _
    $region3: #{sfdp_pallas.1} parent=1 // pred_check_branch
      %15 = sbr.rel (0) target = $region5
    $region4: #{sfdp_pallas.1} parent=1 // pred_region
      _
    $region5: #{sfdp_pallas.1} parent=1 // pred_fallthru
      _
    // Predicated region
    $region6: #{sfdp_pallas.1} parent=1 // pred_check
      _
    $region7: #{sfdp_pallas.1} parent=1 // pred_check_branch
      %17 = sbr.rel (0) target = $region9
    $region8: #{sfdp_pallas.1} parent=1 // pred_region
      %s19 = ssub.s32 2048, 2048
      %20 = vsyncadd [#allocation5], %s19
      %s21 = sshll.u32 [#allocation4], 4
      %s22 = int_to_ptr.vmem [resolvable:$true] %s21
      %27 = dma.hbm_to_vmem [thread:$0]  %s2, 2048, %s22, [#allocation5], 128, 128, 8
    $region9: #{sfdp_pallas.1} parent=1 // pred_fallthru
      _
    // Predicated region
    $region10: #{sfdp_pallas.1} parent=1 // pred_check
      _
    $region11: #{sfdp_pallas.1} parent=1 // pred_check_branch
      %29 = sbr.rel (0) target = $region13
    $region12: #{sfdp_pallas.1} parent=1 // pred_region
      %s31 = ssub.s32 2048, 2048
      %32 = vsyncadd [#allocation8], %s31
      %s33 = sshll.u32 [#allocation7], 4
      %s34 = int_to_ptr.vmem [resolvable:$true] %s33
      %39 = dma.hbm_to_vmem [thread:$0]  %s3, 2048, %s34, [#allocation8], 128, 128, 8
    $region13: #{sfdp_pallas.1} parent=1 // pred_fallthru
      _
    // Predicated region
    $region14: #{sfdp_pallas.1} parent=1 // pred_check
      _
    $region15: #{sfdp_pallas.1} parent=1 // pred_check_branch
      %41 = sbr.rel (0) target = $region17
    $region16: #{sfdp_pallas.1} parent=1 // pred_region
      _
    $region17: #{sfdp_pallas.1} parent=1 // pred_fallthru
      _
    // Predicated region
    $region18: #{sfdp_pallas.1} parent=1 // pred_check
      _
    $region19: #{sfdp_pallas.1} parent=1 // pred_check_branch
      %43 = sbr.rel (0) target = $region21
    $region20: #{sfdp_pallas.1} parent=1 // pred_region
      %44 = dma.done [#allocation5], 2048
    $region21: #{sfdp_pallas.1} parent=1 // pred_fallthru
      _
    // Predicated region
    $region22: #{sfdp_pallas.1} parent=1 // pred_check
      _
    $region23: #{sfdp_pallas.1} parent=1 // pred_check_branch
      %46 = sbr.rel (0) target = $region25
    $region24: #{sfdp_pallas.1} parent=1 // pred_region
      %47 = dma.done [#allocation8], 2048
    $region25: #{sfdp_pallas.1} parent=1 // pred_fallthru
      _
    %v48 = vld [vmem:[%s1] sm:$0xff]
    %v49 = vld [vmem:[%s1 + $0x8] sm:$0xff]
    %v50 = vld [vmem:[%s1 + $0x10] sm:$0xff]
    %v51 = vld [vmem:[%s1 + $0x18] sm:$0xff]
    %v52 = vld [vmem:[%s1 + $0x20] sm:$0xff]
    %v53 = vld [vmem:[%s1 + $0x28] sm:$0xff]
    %v54 = vld [vmem:[%s1 + $0x30] sm:$0xff]
    %v55 = vld [vmem:[%s1 + $0x38] sm:$0xff]
    %v56 = vld [vmem:[%s1 + $0x40] sm:$0xff]
    %v57 = vld [vmem:[%s1 + $0x48] sm:$0xff]
    %v58 = vld [vmem:[%s1 + $0x50] sm:$0xff]
    %v59 = vld [vmem:[%s1 + $0x58] sm:$0xff]
    %v60 = vld [vmem:[%s1 + $0x60] sm:$0xff]
    %v61 = vld [vmem:[%s1 + $0x68] sm:$0xff]
    %v62 = vld [vmem:[%s1 + $0x70] sm:$0xff]
    %v63 = vld [vmem:[%s1 + $0x78] sm:$0xff]
    %v64 = vld [vmem:[#allocation4] sm:$0xff]
    %v65 = vld [vmem:[#allocation4 + $0x8] sm:$0xff]
    %v66 = vld [vmem:[#allocation4 + $0x10] sm:$0xff]
    %v67 = vld [vmem:[#allocation4 + $0x18] sm:$0xff]
    %v68 = vld [vmem:[#allocation4 + $0x20] sm:$0xff]
    %v69 = vld [vmem:[#allocation4 + $0x28] sm:$0xff]
    %v70 = vld [vmem:[#allocation4 + $0x30] sm:$0xff]
    %v71 = vld [vmem:[#allocation4 + $0x38] sm:$0xff]
    %v72 = vld [vmem:[#allocation4 + $0x40] sm:$0xff]
    %v73 = vld [vmem:[#allocation4 + $0x48] sm:$0xff]
    %v74 = vld [vmem:[#allocation4 + $0x50] sm:$0xff]
    %v75 = vld [vmem:[#allocation4 + $0x58] sm:$0xff]
    %v76 = vld [vmem:[#allocation4 + $0x60] sm:$0xff]
    %v77 = vld [vmem:[#allocation4 + $0x68] sm:$0xff]
    %v78 = vld [vmem:[#allocation4 + $0x70] sm:$0xff]
    %v79 = vld [vmem:[#allocation4 + $0x78] sm:$0xff]
    %v80 = vmul.f32 %v48, %v64
    %v81 = vmul.f32 %v49, %v65
    %v82 = vmul.f32 %v50, %v66
    %v83 = vmul.f32 %v51, %v67
    %v84 = vmul.f32 %v52, %v68
    %v85 = vmul.f32 %v53, %v69
    %v86 = vmul.f32 %v54, %v70
    %v87 = vmul.f32 %v55, %v71
    %v88 = vmul.f32 %v56, %v72
    %v89 = vmul.f32 %v57, %v73
    %v90 = vmul.f32 %v58, %v74
    %v91 = vmul.f32 %v59, %v75
    %v92 = vmul.f32 %v60, %v76
    %v93 = vmul.f32 %v61, %v77
    %v94 = vmul.f32 %v62, %v78
    %v95 = vmul.f32 %v63, %v79
    %96 = vmax.xlane.f32.xlu0 %v80
    %v97 = vpop.xlane.xlu0 %96
    %98 = vmax.xlane.f32.xlu0 %v81
    %v99 = vpop.xlane.xlu0 %98
    %100 = vmax.xlane.f32.xlu0 %v82
    %v101 = vpop.xlane.xlu0 %100
    %102 = vmax.xlane.f32.xlu0 %v83
    %v103 = vpop.xlane.xlu0 %102
    %104 = vmax.xlane.f32.xlu0 %v84
    %v105 = vpop.xlane.xlu0 %104
    %106 = vmax.xlane.f32.xlu0 %v85
    %v107 = vpop.xlane.xlu0 %106
    %108 = vmax.xlane.f32.xlu0 %v86
    %v109 = vpop.xlane.xlu0 %108
    %110 = vmax.xlane.f32.xlu0 %v87
    %v111 = vpop.xlane.xlu0 %110
    %112 = vmax.xlane.f32.xlu0 %v88
    %v113 = vpop.xlane.xlu0 %112
    %114 = vmax.xlane.f32.xlu0 %v89
    %v115 = vpop.xlane.xlu0 %114
    %116 = vmax.xlane.f32.xlu0 %v90
    %v117 = vpop.xlane.xlu0 %116
    %118 = vmax.xlane.f32.xlu0 %v91
    %v119 = vpop.xlane.xlu0 %118
    %120 = vmax.xlane.f32.xlu0 %v92
    %v121 = vpop.xlane.xlu0 %120
    %122 = vmax.xlane.f32.xlu0 %v93
    %v123 = vpop.xlane.xlu0 %122
    %124 = vmax.xlane.f32.xlu0 %v94
    %v125 = vpop.xlane.xlu0 %124
    %126 = vmax.xlane.f32.xlu0 %v95
    %v127 = vpop.xlane.xlu0 %126
    %v128 = vsub.f32 %v80, %v97
    %v129 = vsub.f32 %v81, %v99
    %v130 = vsub.f32 %v82, %v101
    %v131 = vsub.f32 %v83, %v103
    %v132 = vsub.f32 %v84, %v105
    %v133 = vsub.f32 %v85, %v107
    %v134 = vsub.f32 %v86, %v109
    %v135 = vsub.f32 %v87, %v111
    %v136 = vsub.f32 %v88, %v113
    %v137 = vsub.f32 %v89, %v115
    %v138 = vsub.f32 %v90, %v117
    %v139 = vsub.f32 %v91, %v119
    %v140 = vsub.f32 %v92, %v121
    %v141 = vsub.f32 %v93, %v123
    %v142 = vsub.f32 %v94, %v125
    %v143 = vsub.f32 %v95, %v127
    %v144 = vmul.f32 %v128, 1.442695
    %v145 = vpow.pop %v144
    %v146 = vmul.f32 %v129, 1.442695
    %v147 = vpow.pop %v146
    %v148 = vmul.f32 %v130, 1.442695
    %v149 = vpow.pop %v148
    %v150 = vmul.f32 %v131, 1.442695
    %v151 = vpow.pop %v150
    %v152 = vmul.f32 %v132, 1.442695
    %v153 = vpow.pop %v152
    %v154 = vmul.f32 %v133, 1.442695
    %v155 = vpow.pop %v154
    %v156 = vmul.f32 %v134, 1.442695
    %v157 = vpow.pop %v156
    %v158 = vmul.f32 %v135, 1.442695
    %v159 = vpow.pop %v158
    %v160 = vmul.f32 %v136, 1.442695
    %v161 = vpow.pop %v160
    %v162 = vmul.f32 %v137, 1.442695
    %v163 = vpow.pop %v162
    %v164 = vmul.f32 %v138, 1.442695
    %v165 = vpow.pop %v164
    %v166 = vmul.f32 %v139, 1.442695
    %v167 = vpow.pop %v166
    %v168 = vmul.f32 %v140, 1.442695
    %v169 = vpow.pop %v168
    %v170 = vmul.f32 %v141, 1.442695
    %v171 = vpow.pop %v170
    %v172 = vmul.f32 %v142, 1.442695
    %v173 = vpow.pop %v172
    %v174 = vmul.f32 %v143, 1.442695
    %v175 = vpow.pop %v174
    %176 = vadd.xlane.f32.xlu0 %v145
    %v177 = vpop.xlane.xlu0 %176
    %178 = vadd.xlane.f32.xlu0 %v147
    %v179 = vpop.xlane.xlu0 %178
    %180 = vadd.xlane.f32.xlu0 %v149
    %v181 = vpop.xlane.xlu0 %180
    %182 = vadd.xlane.f32.xlu0 %v151
    %v183 = vpop.xlane.xlu0 %182
    %184 = vadd.xlane.f32.xlu0 %v153
    %v185 = vpop.xlane.xlu0 %184
    %186 = vadd.xlane.f32.xlu0 %v155
    %v187 = vpop.xlane.xlu0 %186
    %188 = vadd.xlane.f32.xlu0 %v157
    %v189 = vpop.xlane.xlu0 %188
    %190 = vadd.xlane.f32.xlu0 %v159
    %v191 = vpop.xlane.xlu0 %190
    %192 = vadd.xlane.f32.xlu0 %v161
    %v193 = vpop.xlane.xlu0 %192
    %194 = vadd.xlane.f32.xlu0 %v163
    %v195 = vpop.xlane.xlu0 %194
    %196 = vadd.xlane.f32.xlu0 %v165
    %v197 = vpop.xlane.xlu0 %196
    %198 = vadd.xlane.f32.xlu0 %v167
    %v199 = vpop.xlane.xlu0 %198
    %200 = vadd.xlane.f32.xlu0 %v169
    %v201 = vpop.xlane.xlu0 %200
    %202 = vadd.xlane.f32.xlu0 %v171
    %v203 = vpop.xlane.xlu0 %202
    %204 = vadd.xlane.f32.xlu0 %v173
    %v205 = vpop.xlane.xlu0 %204
    %206 = vadd.xlane.f32.xlu0 %v175
    %v207 = vpop.xlane.xlu0 %206
    %v208 = vrcp.pop %v177
    %v209 = vmul.f32 1.0, %v208
    %v210 = vrcp.pop %v179
    %v211 = vmul.f32 1.0, %v210
    %v212 = vrcp.pop %v181
    %v213 = vmul.f32 1.0, %v212
    %v214 = vrcp.pop %v183
    %v215 = vmul.f32 1.0, %v214
    %v216 = vrcp.pop %v185
    %v217 = vmul.f32 1.0, %v216
    %v218 = vrcp.pop %v187
    %v219 = vmul.f32 1.0, %v218
    %v220 = vrcp.pop %v189
    %v221 = vmul.f32 1.0, %v220
    %v222 = vrcp.pop %v191
    %v223 = vmul.f32 1.0, %v222
    %v224 = vrcp.pop %v193
    %v225 = vmul.f32 1.0, %v224
    %v226 = vrcp.pop %v195
    %v227 = vmul.f32 1.0, %v226
    %v228 = vrcp.pop %v197
    %v229 = vmul.f32 1.0, %v228
    %v230 = vrcp.pop %v199
    %v231 = vmul.f32 1.0, %v230
    %v232 = vrcp.pop %v201
    %v233 = vmul.f32 1.0, %v232
    %v234 = vrcp.pop %v203
    %v235 = vmul.f32 1.0, %v234
    %v236 = vrcp.pop %v205
    %v237 = vmul.f32 1.0, %v236
    %v238 = vrcp.pop %v207
    %v239 = vmul.f32 1.0, %v238
    %v240 = vmul.f32 %v145, %v209
    %v241 = vmul.f32 %v147, %v211
    %v242 = vmul.f32 %v149, %v213
    %v243 = vmul.f32 %v151, %v215
    %v244 = vmul.f32 %v153, %v217
    %v245 = vmul.f32 %v155, %v219
    %v246 = vmul.f32 %v157, %v221
    %v247 = vmul.f32 %v159, %v223
    %v248 = vmul.f32 %v161, %v225
    %v249 = vmul.f32 %v163, %v227
    %v250 = vmul.f32 %v165, %v229
    %v251 = vmul.f32 %v167, %v231
    %v252 = vmul.f32 %v169, %v233
    %v253 = vmul.f32 %v171, %v235
    %v254 = vmul.f32 %v173, %v237
    %v255 = vmul.f32 %v175, %v239
    %v256 = vld [vmem:[%s4] sm:$0xff]
    %v257 = vld [vmem:[%s4 + $0x8] sm:$0xff]
    %v258 = vld [vmem:[%s4 + $0x10] sm:$0xff]
    %v259 = vld [vmem:[%s4 + $0x18] sm:$0xff]
    %v260 = vld [vmem:[%s4 + $0x20] sm:$0xff]
    %v261 = vld [vmem:[%s4 + $0x28] sm:$0xff]
    %v262 = vld [vmem:[%s4 + $0x30] sm:$0xff]
    %v263 = vld [vmem:[%s4 + $0x38] sm:$0xff]
    %v264 = vld [vmem:[%s4 + $0x40] sm:$0xff]
    %v265 = vld [vmem:[%s4 + $0x48] sm:$0xff]
    %v266 = vld [vmem:[%s4 + $0x50] sm:$0xff]
    %v267 = vld [vmem:[%s4 + $0x58] sm:$0xff]
    %v268 = vld [vmem:[%s4 + $0x60] sm:$0xff]
    %v269 = vld [vmem:[%s4 + $0x68] sm:$0xff]
    %v270 = vld [vmem:[%s4 + $0x70] sm:$0xff]
    %v271 = vld [vmem:[%s4 + $0x78] sm:$0xff]
    %v272 = vadd.f32 %v240, %v256
    %v273 = vadd.f32 %v241, %v257
    %v274 = vadd.f32 %v242, %v258
    %v275 = vadd.f32 %v243, %v259
    %v276 = vadd.f32 %v244, %v260
    %v277 = vadd.f32 %v245, %v261
    %v278 = vadd.f32 %v246, %v262
    %v279 = vadd.f32 %v247, %v263
    %v280 = vadd.f32 %v248, %v264
    %v281 = vadd.f32 %v249, %v265
    %v282 = vadd.f32 %v250, %v266
    %v283 = vadd.f32 %v251, %v267
    %v284 = vadd.f32 %v252, %v268
    %v285 = vadd.f32 %v253, %v269
    %v286 = vadd.f32 %v254, %v270
    %v287 = vadd.f32 %v255, %v271
    %v288 = vlaneseq
    %v289 = vshrl.u32 %v288, 7
    %v290 = vadd.s32 %v289, 8
    %v291 = vadd.s32 %v289, 16
    %v292 = vadd.s32 %v289, 24
    %v293 = vadd.s32 %v289, 32
    %v294 = vadd.s32 %v289, 40
    %v295 = vadd.s32 %v289, 48
    %v296 = vadd.s32 %v289, 56
    %v297 = vadd.s32 %v289, 64
    %v298 = vadd.s32 %v289, 72
    %v299 = vadd.s32 %v289, 80
    %v300 = vadd.s32 %v289, 88
    %v301 = vadd.s32 %v289, 96
    %v302 = vadd.s32 %v289, 104
    %v303 = vadd.s32 %v289, 112
    %v304 = vadd.s32 %v289, 120
    %v305 = vlaneseq
    %v306 = vand.u32 %v305, 127
    %s307 = smul.u32 0, 128
    %v308 = vstv %s307
    %v309 = vadd.s32 %v308, %v289
    %v310 = vadd.s32 %v308, %v290
    %v311 = vadd.s32 %v308, %v291
    %v312 = vadd.s32 %v308, %v292
    %v313 = vadd.s32 %v308, %v293
    %v314 = vadd.s32 %v308, %v294
    %v315 = vadd.s32 %v308, %v295
    %v316 = vadd.s32 %v308, %v296
    %v317 = vadd.s32 %v308, %v297
    %v318 = vadd.s32 %v308, %v298
    %v319 = vadd.s32 %v308, %v299
    %v320 = vadd.s32 %v308, %v300
    %v321 = vadd.s32 %v308, %v301
    %v322 = vadd.s32 %v308, %v302
    %v323 = vadd.s32 %v308, %v303
    %v324 = vadd.s32 %v308, %v304
    %v325 = vmul.u32 %v309, 128
    %v326 = vmul.u32 %v310, 128
    %v327 = vmul.u32 %v311, 128
    %v328 = vmul.u32 %v312, 128
    %v329 = vmul.u32 %v313, 128
    %v330 = vmul.u32 %v314, 128
    %v331 = vmul.u32 %v315, 128
    %v332 = vmul.u32 %v316, 128
    %v333 = vmul.u32 %v317, 128
    %v334 = vmul.u32 %v318, 128
    %v335 = vmul.u32 %v319, 128
    %v336 = vmul.u32 %v320, 128
    %v337 = vmul.u32 %v321, 128
    %v338 = vmul.u32 %v322, 128
    %v339 = vmul.u32 %v323, 128
    %v340 = vmul.u32 %v324, 128
    %v341 = vadd.s32 %v325, %v306
    %v342 = vadd.s32 %v326, %v306
    %v343 = vadd.s32 %v327, %v306
    %v344 = vadd.s32 %v328, %v306
    %v345 = vadd.s32 %v329, %v306
    %v346 = vadd.s32 %v330, %v306
    %v347 = vadd.s32 %v331, %v306
    %v348 = vadd.s32 %v332, %v306
    %v349 = vadd.s32 %v333, %v306
    %v350 = vadd.s32 %v334, %v306
    %v351 = vadd.s32 %v335, %v306
    %v352 = vadd.s32 %v336, %v306
    %v353 = vadd.s32 %v337, %v306
    %v354 = vadd.s32 %v338, %v306
    %v355 = vadd.s32 %v339, %v306
    %v356 = vadd.s32 %v340, %v306
    %s357 = sld [smem:[#allocation3]]
    %s358 = smul.u32 %s357, 2654435769
    %v359 = vstv %s358
    %v360 = vxor.u32 %v341, %v359
    %v361 = vxor.u32 %v342, %v359
    %v362 = vxor.u32 %v343, %v359
    %v363 = vxor.u32 %v344, %v359
    %v364 = vxor.u32 %v345, %v359
    %v365 = vxor.u32 %v346, %v359
    %v366 = vxor.u32 %v347, %v359
    %v367 = vxor.u32 %v348, %v359
    %v368 = vxor.u32 %v349, %v359
    %v369 = vxor.u32 %v350, %v359
    %v370 = vxor.u32 %v351, %v359
    %v371 = vxor.u32 %v352, %v359
    %v372 = vxor.u32 %v353, %v359
    %v373 = vxor.u32 %v354, %v359
    %v374 = vxor.u32 %v355, %v359
    %v375 = vxor.u32 %v356, %v359
    %v376 = vshrl.u32 %v360, 16
    %v377 = vshrl.u32 %v361, 16
    %v378 = vshrl.u32 %v362, 16
    %v379 = vshrl.u32 %v363, 16
    %v380 = vshrl.u32 %v364, 16
    %v381 = vshrl.u32 %v365, 16
    %v382 = vshrl.u32 %v366, 16
    %v383 = vshrl.u32 %v367, 16
    %v384 = vshrl.u32 %v368, 16
    %v385 = vshrl.u32 %v369, 16
    %v386 = vshrl.u32 %v370, 16
    %v387 = vshrl.u32 %v371, 16
    %v388 = vshrl.u32 %v372, 16
    %v389 = vshrl.u32 %v373, 16
    %v390 = vshrl.u32 %v374, 16
    %v391 = vshrl.u32 %v375, 16
    %v392 = vxor.u32 %v360, %v376
    %v393 = vxor.u32 %v361, %v377
    %v394 = vxor.u32 %v362, %v378
    %v395 = vxor.u32 %v363, %v379
    %v396 = vxor.u32 %v364, %v380
    %v397 = vxor.u32 %v365, %v381
    %v398 = vxor.u32 %v366, %v382
    %v399 = vxor.u32 %v367, %v383
    %v400 = vxor.u32 %v368, %v384
    %v401 = vxor.u32 %v369, %v385
    %v402 = vxor.u32 %v370, %v386
    %v403 = vxor.u32 %v371, %v387
    %v404 = vxor.u32 %v372, %v388
    %v405 = vxor.u32 %v373, %v389
    %v406 = vxor.u32 %v374, %v390
    %v407 = vxor.u32 %v375, %v391
    %v408 = vmul.u32 %v392, 2246822507
    %v409 = vmul.u32 %v393, 2246822507
    %v410 = vmul.u32 %v394, 2246822507
    %v411 = vmul.u32 %v395, 2246822507
    %v412 = vmul.u32 %v396, 2246822507
    %v413 = vmul.u32 %v397, 2246822507
    %v414 = vmul.u32 %v398, 2246822507
    %v415 = vmul.u32 %v399, 2246822507
    %v416 = vmul.u32 %v400, 2246822507
    %v417 = vmul.u32 %v401, 2246822507
    %v418 = vmul.u32 %v402, 2246822507
    %v419 = vmul.u32 %v403, 2246822507
    %v420 = vmul.u32 %v404, 2246822507
    %v421 = vmul.u32 %v405, 2246822507
    %v422 = vmul.u32 %v406, 2246822507
    %v423 = vmul.u32 %v407, 2246822507
    %v424 = vshrl.u32 %v408, 13
    %v425 = vshrl.u32 %v409, 13
    %v426 = vshrl.u32 %v410, 13
    %v427 = vshrl.u32 %v411, 13
    %v428 = vshrl.u32 %v412, 13
    %v429 = vshrl.u32 %v413, 13
    %v430 = vshrl.u32 %v414, 13
    %v431 = vshrl.u32 %v415, 13
    %v432 = vshrl.u32 %v416, 13
    %v433 = vshrl.u32 %v417, 13
    %v434 = vshrl.u32 %v418, 13
    %v435 = vshrl.u32 %v419, 13
    %v436 = vshrl.u32 %v420, 13
    %v437 = vshrl.u32 %v421, 13
    %v438 = vshrl.u32 %v422, 13
    %v439 = vshrl.u32 %v423, 13
    %v440 = vxor.u32 %v408, %v424
    %v441 = vxor.u32 %v409, %v425
    %v442 = vxor.u32 %v410, %v426
    %v443 = vxor.u32 %v411, %v427
    %v444 = vxor.u32 %v412, %v428
    %v445 = vxor.u32 %v413, %v429
    %v446 = vxor.u32 %v414, %v430
    %v447 = vxor.u32 %v415, %v431
    %v448 = vxor.u32 %v416, %v432
    %v449 = vxor.u32 %v417, %v433
    %v450 = vxor.u32 %v418, %v434
    %v451 = vxor.u32 %v419, %v435
    %v452 = vxor.u32 %v420, %v436
    %v453 = vxor.u32 %v421, %v437
    %v454 = vxor.u32 %v422, %v438
    %v455 = vxor.u32 %v423, %v439
    %v456 = vmul.u32 %v440, 3266489909
    %v457 = vmul.u32 %v441, 3266489909
    %v458 = vmul.u32 %v442, 3266489909
    %v459 = vmul.u32 %v443, 3266489909
    %v460 = vmul.u32 %v444, 3266489909
    %v461 = vmul.u32 %v445, 3266489909
    %v462 = vmul.u32 %v446, 3266489909
    %v463 = vmul.u32 %v447, 3266489909
    %v464 = vmul.u32 %v448, 3266489909
    %v465 = vmul.u32 %v449, 3266489909
    %v466 = vmul.u32 %v450, 3266489909
    %v467 = vmul.u32 %v451, 3266489909
    %v468 = vmul.u32 %v452, 3266489909
    %v469 = vmul.u32 %v453, 3266489909
    %v470 = vmul.u32 %v454, 3266489909
    %v471 = vmul.u32 %v455, 3266489909
    %v472 = vshrl.u32 %v456, 16
    %v473 = vshrl.u32 %v457, 16
    %v474 = vshrl.u32 %v458, 16
    %v475 = vshrl.u32 %v459, 16
    %v476 = vshrl.u32 %v460, 16
    %v477 = vshrl.u32 %v461, 16
    %v478 = vshrl.u32 %v462, 16
    %v479 = vshrl.u32 %v463, 16
    %v480 = vshrl.u32 %v464, 16
    %v481 = vshrl.u32 %v465, 16
    %v482 = vshrl.u32 %v466, 16
    %v483 = vshrl.u32 %v467, 16
    %v484 = vshrl.u32 %v468, 16
    %v485 = vshrl.u32 %v469, 16
    %v486 = vshrl.u32 %v470, 16
    %v487 = vshrl.u32 %v471, 16
    %v488 = vxor.u32 %v456, %v472
    %v489 = vxor.u32 %v457, %v473
    %v490 = vxor.u32 %v458, %v474
    %v491 = vxor.u32 %v459, %v475
    %v492 = vxor.u32 %v460, %v476
    %v493 = vxor.u32 %v461, %v477
    %v494 = vxor.u32 %v462, %v478
    %v495 = vxor.u32 %v463, %v479
    %v496 = vxor.u32 %v464, %v480
    %v497 = vxor.u32 %v465, %v481
    %v498 = vxor.u32 %v466, %v482
    %v499 = vxor.u32 %v467, %v483
    %v500 = vxor.u32 %v468, %v484
    %v501 = vxor.u32 %v469, %v485
    %v502 = vxor.u32 %v470, %v486
    %v503 = vxor.u32 %v471, %v487
    %v504 = vshrl.u32 %v488, 8
    %v505 = vshrl.u32 %v489, 8
    %v506 = vshrl.u32 %v490, 8
    %v507 = vshrl.u32 %v491, 8
    %v508 = vshrl.u32 %v492, 8
    %v509 = vshrl.u32 %v493, 8
    %v510 = vshrl.u32 %v494, 8
    %v511 = vshrl.u32 %v495, 8
    %v512 = vshrl.u32 %v496, 8
    %v513 = vshrl.u32 %v497, 8
    %v514 = vshrl.u32 %v498, 8
    %v515 = vshrl.u32 %v499, 8
    %v516 = vshrl.u32 %v500, 8
    %v517 = vshrl.u32 %v501, 8
    %v518 = vshrl.u32 %v502, 8
    %v519 = vshrl.u32 %v503, 8
    %vm520 = vcmp.ge.s32.totalorder %v504, 1677721
    %vm521 = vcmp.ge.s32.totalorder %v505, 1677721
    %vm522 = vcmp.ge.s32.totalorder %v506, 1677721
    %vm523 = vcmp.ge.s32.totalorder %v507, 1677721
    %vm524 = vcmp.ge.s32.totalorder %v508, 1677721
    %vm525 = vcmp.ge.s32.totalorder %v509, 1677721
    %vm526 = vcmp.ge.s32.totalorder %v510, 1677721
    %vm527 = vcmp.ge.s32.totalorder %v511, 1677721
    %vm528 = vcmp.ge.s32.totalorder %v512, 1677721
    %vm529 = vcmp.ge.s32.totalorder %v513, 1677721
    %vm530 = vcmp.ge.s32.totalorder %v514, 1677721
    %vm531 = vcmp.ge.s32.totalorder %v515, 1677721
    %vm532 = vcmp.ge.s32.totalorder %v516, 1677721
    %vm533 = vcmp.ge.s32.totalorder %v517, 1677721
    %vm534 = vcmp.ge.s32.totalorder %v518, 1677721
    %vm535 = vcmp.ge.s32.totalorder %v519, 1677721
    %v536 = vmul.f32 %v272, 1.1111112
    %v537 = vmul.f32 %v273, 1.1111112
    %v538 = vmul.f32 %v274, 1.1111112
    %v539 = vmul.f32 %v275, 1.1111112
    %v540 = vmul.f32 %v276, 1.1111112
    %v541 = vmul.f32 %v277, 1.1111112
    %v542 = vmul.f32 %v278, 1.1111112
    %v543 = vmul.f32 %v279, 1.1111112
    %v544 = vmul.f32 %v280, 1.1111112
    %v545 = vmul.f32 %v281, 1.1111112
    %v546 = vmul.f32 %v282, 1.1111112
    %v547 = vmul.f32 %v283, 1.1111112
    %v548 = vmul.f32 %v284, 1.1111112
    %v549 = vmul.f32 %v285, 1.1111112
    %v550 = vmul.f32 %v286, 1.1111112
    %v551 = vmul.f32 %v287, 1.1111112
    %v552 = vsel %vm520, %v536, 0.0
    %v553 = vsel %vm521, %v537, 0.0
    %v554 = vsel %vm522, %v538, 0.0
    %v555 = vsel %vm523, %v539, 0.0
    %v556 = vsel %vm524, %v540, 0.0
    %v557 = vsel %vm525, %v541, 0.0
    %v558 = vsel %vm526, %v542, 0.0
    %v559 = vsel %vm527, %v543, 0.0
    %v560 = vsel %vm528, %v544, 0.0
    %v561 = vsel %vm529, %v545, 0.0
    %v562 = vsel %vm530, %v546, 0.0
    %v563 = vsel %vm531, %v547, 0.0
    %v564 = vsel %vm532, %v548, 0.0
    %v565 = vsel %vm533, %v549, 0.0
    %v566 = vsel %vm534, %v550, 0.0
    %v567 = vsel %vm535, %v551, 0.0
    %v568 = vld [vmem:[#allocation7] sm:$0xff]
    %v569 = vld [vmem:[#allocation7 + $0x8] sm:$0xff]
    %v570 = vld [vmem:[#allocation7 + $0x10] sm:$0xff]
    %v571 = vld [vmem:[#allocation7 + $0x18] sm:$0xff]
    %v572 = vld [vmem:[#allocation7 + $0x20] sm:$0xff]
    %v573 = vld [vmem:[#allocation7 + $0x28] sm:$0xff]
    %v574 = vld [vmem:[#allocation7 + $0x30] sm:$0xff]
    %v575 = vld [vmem:[#allocation7 + $0x38] sm:$0xff]
    %v576 = vld [vmem:[#allocation7 + $0x40] sm:$0xff]
    %v577 = vld [vmem:[#allocation7 + $0x48] sm:$0xff]
    %v578 = vld [vmem:[#allocation7 + $0x50] sm:$0xff]
    %v579 = vld [vmem:[#allocation7 + $0x58] sm:$0xff]
    %v580 = vld [vmem:[#allocation7 + $0x60] sm:$0xff]
    %v581 = vld [vmem:[#allocation7 + $0x68] sm:$0xff]
    %v582 = vld [vmem:[#allocation7 + $0x70] sm:$0xff]
    %v583 = vld [vmem:[#allocation7 + $0x78] sm:$0xff]
    %v584 = vmul.f32 %v552, %v568
    %v585 = vmul.f32 %v553, %v569
    %v586 = vmul.f32 %v554, %v570
    %v587 = vmul.f32 %v555, %v571
    %v588 = vmul.f32 %v556, %v572
    %v589 = vmul.f32 %v557, %v573
    %v590 = vmul.f32 %v558, %v574
    %v591 = vmul.f32 %v559, %v575
    %v592 = vmul.f32 %v560, %v576
    %v593 = vmul.f32 %v561, %v577
    %v594 = vmul.f32 %v562, %v578
    %v595 = vmul.f32 %v563, %v579
    %v596 = vmul.f32 %v564, %v580
    %v597 = vmul.f32 %v565, %v581
    %v598 = vmul.f32 %v566, %v582
    %v599 = vmul.f32 %v567, %v583
    %600 = vst [vmem:[#allocation9] sm:$0xff] %v584
    %601 = vst [vmem:[#allocation9 + $0x8] sm:$0xff] %v585
    %602 = vst [vmem:[#allocation9 + $0x10] sm:$0xff] %v586
    %603 = vst [vmem:[#allocation9 + $0x18] sm:$0xff] %v587
    %604 = vst [vmem:[#allocation9 + $0x20] sm:$0xff] %v588
    %605 = vst [vmem:[#allocation9 + $0x28] sm:$0xff] %v589
    %606 = vst [vmem:[#allocation9 + $0x30] sm:$0xff] %v590
    %607 = vst [vmem:[#allocation9 + $0x38] sm:$0xff] %v591
    %608 = vst [vmem:[#allocation9 + $0x40] sm:$0xff] %v592
    %609 = vst [vmem:[#allocation9 + $0x48] sm:$0xff] %v593
    %610 = vst [vmem:[#allocation9 + $0x50] sm:$0xff] %v594
    %611 = vst [vmem:[#allocation9 + $0x58] sm:$0xff] %v595
    %612 = vst [vmem:[#allocation9 + $0x60] sm:$0xff] %v596
    %613 = vst [vmem:[#allocation9 + $0x68] sm:$0xff] %v597
    %614 = vst [vmem:[#allocation9 + $0x70] sm:$0xff] %v598
    %615 = vst [vmem:[#allocation9 + $0x78] sm:$0xff] %v599
    // Predicated region
    $region26: #{sfdp_pallas.1} parent=1 // pred_check
      _
    $region27: #{sfdp_pallas.1} parent=1 // pred_check_branch
      %617 = sbr.rel (0) target = $region29
    $region28: #{sfdp_pallas.1} parent=1 // pred_region
      %s619 = ssub.s32 2048, 2048
      %620 = vsyncadd [#allocation6], %s619
      %s621 = sshll.u32 [#allocation9], 4
      %s622 = int_to_ptr.vmem [resolvable:$true] %s621
      %627 = dma.vmem_to_hbm [thread:$0]  %s622, 2048, %s5, [#allocation6], 128, 128, 8
    $region29: #{sfdp_pallas.1} parent=1 // pred_fallthru
      _
    // Predicated region
    $region30: #{sfdp_pallas.1} parent=1 // pred_check
      _
    $region31: #{sfdp_pallas.1} parent=1 // pred_check_branch
      %629 = sbr.rel (0) target = $region33
    $region32: #{sfdp_pallas.1} parent=1 // pred_region
      %630 = dma.done [#allocation6], 2048
    $region33: #{sfdp_pallas.1} parent=1 // pred_fallthru
      _
    %631 = vsyncpa [#allocation5], 1
    %632 = vsyncpa [#allocation8], 1
    %633 = vsyncpa [#allocation6], 1

</llo_original>
